<compile_context>
chip_gen: v7x
topology: tpu7x:2x2x1
jax: 0.10.0
libtpu: 0.0.40
codegen_flags: <defaults>
</compile_context>

<pallas_src>
import functools

import jax
import jax.numpy as jnp
from jax import lax
from jax.experimental import pallas as pl
from jax.experimental.pallas import tpu as pltpu

EPS = 1e-5


# ---------------------------------------------------------------------------
# kernels
# ---------------------------------------------------------------------------
def _fused_kernel(patch_ref, w_ref, o_ref):
    """Single-tile path: GEMM -> InstanceNorm (per channel over 4 parities x P) -> ReLU."""
    # patch_ref: (1, 4*Cin, P); w_ref: (4*Cout, 4*Cin); o_ref: (1, 4*Cout, P)
    acc = jnp.dot(w_ref[...], patch_ref[0],
                  preferred_element_type=jnp.float32)            # (4*Cout, P) f32
    cout = o_ref.shape[1] // 4
    cnt = 4.0 * acc.shape[1]                                     # Hout*Wout
    # per-channel mean over the 4 parity row-blocks and all lanes
    s_row = jnp.sum(acc, axis=1, keepdims=True)                  # (4*Cout, 1)
    mean_r = jnp.tile(jnp.sum(s_row.reshape(4, cout, 1), axis=0) / cnt, (4, 1))
    cen = acc - mean_r
    q_row = jnp.sum(cen * cen, axis=1, keepdims=True)            # (4*Cout, 1)
    var_ch = jnp.sum(q_row.reshape(4, cout, 1), axis=0) / cnt    # biased variance
    inv_r = jnp.tile(lax.rsqrt(var_ch + EPS), (4, 1))            # (4*Cout, 1)
    o_ref[0] = jnp.maximum(cen * inv_r, 0.0).astype(o_ref.dtype)


def _stats_kernel(patch_ref, w_ref, stat_ref, *, total_count):
    """Tiled path, pass 1: accumulate per-(batch, channel) sum / sum-of-squares
    across spatial tiles (resident accumulator block), finalize to [mean, inv_std]."""
    t = pl.program_id(1)
    cout = stat_ref.shape[1]
    acc = jnp.dot(w_ref[...], patch_ref[0],
                  preferred_element_type=jnp.float32)            # (4*Cout, TP) f32
    s_row = jnp.sum(acc, axis=1, keepdims=True)                  # (4*Cout, 1)
    q_row = jnp.sum(acc * acc, axis=1, keepdims=True)
    s_ch = jnp.sum(s_row.reshape(4, cout, 1), axis=0)            # (Cout, 1)
    q_ch = jnp.sum(q_row.reshape(4, cout, 1), axis=0)

    @pl.when(t == 0)
    def _():
        stat_ref[...] = jnp.zeros_like(stat_ref)

    stat_ref[...] += jnp.concatenate([s_ch, q_ch], axis=1)[None]  # (1, Cout, 2)

    @pl.when(t == pl.num_programs(1) - 1)
    def _():
        st = stat_ref[0]                                         # (Cout, 2)
        mean = st[:, 0:1] / total_count
        var = st[:, 1:2] / total_count - mean * mean             # biased variance
        stat_ref[0] = jnp.concatenate([mean, lax.rsqrt(var + EPS)], axis=1)


def _apply_kernel(patch_ref, w_ref, stat_ref, o_ref):
    """Tiled path, pass 2: recompute the tile GEMM (cheaper than an HBM round-trip
    of the pre-norm activations), normalize with the precomputed stats, ReLU."""
    acc = jnp.dot(w_ref[...], patch_ref[0],
                  preferred_element_type=jnp.float32)            # (4*Cout, TP) f32
    st = stat_ref[0]                                             # (Cout, 2) = [mean, inv_std]
    mean_r = jnp.tile(st[:, 0:1], (4, 1))                        # (4*Cout, 1)
    inv_r = jnp.tile(st[:, 1:2], (4, 1))
    o_ref[0] = jnp.maximum((acc - mean_r) * inv_r, 0.0).astype(o_ref.dtype)


# ---------------------------------------------------------------------------
# wrapper
# ---------------------------------------------------------------------------
def _pick_spatial_tile(p_total, target):
    """Largest lane-aligned (multiple of 128) divisor of p_total that is <= target;
    falls back to a single full-extent tile if none exists."""
    if p_total <= target:
        return p_total
    t = (target // 128) * 128
    while t >= 128:
        if p_total % t == 0:
            return t
        t -= 128
    return p_total


def _parity_weight(weight, compute_dtype):
    """(Cin, Cout, 3, 3) PyTorch ConvTranspose2d weight -> (4*Cout, 4*Cin) parity GEMM weight.

    Row block p in {0:even/even, 1:even/odd, 2:odd/even, 3:odd/odd} (output parity),
    column block j in {0:x[m,n], 1:x[m,n+1], 2:x[m+1,n], 3:x[m+1,n+1]} (input shift).
    """
    cin, cout = weight.shape[0], weight.shape[1]
    w = weight.astype(jnp.float32)

    def tap(kh, kw):
        return jnp.transpose(w[:, :, kh, kw], (1, 0))            # (Cout, Cin)

    blk = jnp.zeros((4, 4, cout, cin), jnp.float32)
    blk = blk.at[0, 0].set(tap(1, 1))
    blk = blk.at[1, 0].set(tap(1, 2))
    blk = blk.at[1, 1].set(tap(1, 0))
    blk = blk.at[2, 0].set(tap(2, 1))
    blk = blk.at[2, 2].set(tap(0, 1))
    blk = blk.at[3, 0].set(tap(2, 2))
    blk = blk.at[3, 1].set(tap(2, 0))
    blk = blk.at[3, 2].set(tap(0, 2))
    blk = blk.at[3, 3].set(tap(0, 0))
    return jnp.transpose(blk, (0, 2, 1, 3)).reshape(4 * cout, 4 * cin).astype(compute_dtype)


def model_up_forward(x_nchw, weight, bias=None, *,
                     compute_dtype=jnp.bfloat16, tp_target=2048):
    """model_up forward: ConvTranspose2d(Cin,Cout,3,stride=2,pad=1,out_pad=1)
    -> InstanceNorm2d(affine=False) -> ReLU.

    x_nchw: (N, Cin, H, W); weight: (Cin, Cout, 3, 3); bias: (Cout,) (ignored:
    a per-channel bias is exactly cancelled by the instance norm's mean
    subtraction).  Returns (N, Cout, 2H, 2W) in x's dtype.  MXU operands are
    cast to `compute_dtype` (bf16 by default, halving HBM reads); all
    accumulation and norm math stays f32.
    """
    del bias                                     # mathematical no-op before InstanceNorm
    N, Cin, H, W = x_nchw.shape
    Cout = weight.shape[1]
    P, K, R = H * W, 4 * Cin, 4 * Cout
    out_dtype = x_nchw.dtype

    # glue: 4 shifted copies of the NCHW input (sub-pixel decomposition of the
    # stride-2 deconv) -> (N, 4*Cin, H*W).  No zero-dilated im2col (9x less
    # patch HBM than before) and no NCHW<->NHWC transpose.
    xp = jnp.pad(x_nchw, ((0, 0), (0, 0), (0, 1), (0, 1)))
    patches = jnp.concatenate(
        [xp[:, :, :H, :W], xp[:, :, :H, 1:], xp[:, :, 1:, :W], xp[:, :, 1:, 1:]],
        axis=1).reshape(N, K, P).astype(compute_dtype)

    w_r = _parity_weight(weight, compute_dtype)                  # (R, K)

    TP = _pick_spatial_tile(P, tp_target)                        # lane-dense spatial tile
    num_t = P // TP
    vmem_cap = 48 * 1024 * 1024                                  # headroom even on v7x (64 MiB)

    patch_spec = pl.BlockSpec((1, K, TP), lambda n, t: (n, 0, t))
    w_spec = pl.BlockSpec((R, K), lambda n, t: (0, 0))
    out_spec = pl.BlockSpec((1, R, TP), lambda n, t: (n, 0, t))

    if num_t == 1:
        # whole image fits one lane tile -> single fused GEMM + norm + ReLU pass
        out = pl.pallas_call(
            _fused_kernel,
            out_shape=jax.ShapeDtypeStruct((N, R, P), out_dtype),
            grid_spec=pltpu.PrefetchScalarGridSpec(
                num_scalar_prefetch=0, grid=(N, 1),
                in_specs=[patch_spec, w_spec],
                out_specs=out_spec),
            compiler_params=pltpu.CompilerParams(
                dimension_semantics=("parallel", "arbitrary"),
                vmem_limit_bytes=vmem_cap),
        )(patches, w_r)
    else:
        stat_spec = pl.BlockSpec((1, Cout, 2), lambda n, t: (n, 0, 0))
        # pass 1: per-(batch, channel) stats over all spatial tiles
        stats = pl.pallas_call(
            functools.partial(_stats_kernel, total_count=float(4 * P)),
            out_shape=jax.ShapeDtypeStruct((N, Cout, 2), jnp.float32),
            grid_spec=pltpu.PrefetchScalarGridSpec(
                num_scalar_prefetch=0, grid=(N, num_t),
                in_specs=[patch_spec, w_spec],
                out_specs=stat_spec),
            compiler_params=pltpu.CompilerParams(
                dimension_semantics=("parallel", "arbitrary"),
                vmem_limit_bytes=vmem_cap),
        )(patches, w_r)
        # pass 2: fully parallel tiles (both axes "parallel" -> v7x megacore split)
        out = pl.pallas_call(
            _apply_kernel,
            out_shape=jax.ShapeDtypeStruct((N, R, P), out_dtype),
            grid_spec=pltpu.PrefetchScalarGridSpec(
                num_scalar_prefetch=0, grid=(N, num_t),
                in_specs=[patch_spec, w_spec, stat_spec],
                out_specs=out_spec),
            compiler_params=pltpu.CompilerParams(
                dimension_semantics=("parallel", "parallel"),
                vmem_limit_bytes=vmem_cap),
        )(patches, w_r, stats)

    # glue: interleave the 4 output parities back to NCHW (single XLA transpose).
    out = out.reshape(N, 2, 2, Cout, H, W)                       # (n, pr, pc, oc, h, w)
    out = jnp.transpose(out, (0, 3, 4, 1, 5, 2))                 # (n, oc, h, pr, w, pc)
    return out.reshape(N, Cout, 2 * H, 2 * W)


# ---------------------------------------------------------------------------
# reference + self-test
# ---------------------------------------------------------------------------
def _reference(x_nchw, weight, bias):
    """Plain-JAX (XLA conv) reference of the exact PyTorch module, in f32."""
    x = jnp.transpose(x_nchw, (0, 2, 3, 1))
    w_hwio = jnp.transpose(jnp.flip(weight, axis=(2, 3)), (2, 3, 0, 1))   # (3,3,Cin,Cout)
    y = lax.conv_general_dilated(
        x, w_hwio, window_strides=(1, 1), padding=[(1, 2), (1, 2)],
        lhs_dilation=(2, 2), rhs_dilation=(1, 1),
        dimension_numbers=("NHWC", "HWIO", "NHWC"))
    y = y + bias[None, None, None, :]
    mean = jnp.mean(y, axis=(1, 2), keepdims=True)
    var = jnp.mean((y - mean) ** 2, axis=(1, 2), keepdims=True)
    y = jnp.maximum((y - mean) * lax.rsqrt(var + EPS), 0.0)
    return jnp.transpose(y, (0, 3, 1, 2))


if __name__ == "__main__":
    key = jax.random.PRNGKey(0)
    k1, k2, k3 = jax.random.split(key, 3)

    N, Cin, Cout, H, W = 2, 4, 8, 16, 16
    x = jax.random.normal(k1, (N, Cin, H, W), jnp.float32)

    fan = Cin * 3 * 3
    bound = 1.0 / jnp.sqrt(fan)
    weight = jax.random.uniform(k2, (Cin, Cout, 3, 3), jnp.float32, -bound, bound)
    bias = jax.random.uniform(k3, (Cout,), jnp.float32, -bound, bound)

    ref = _reference(x, weight, bias)

    # 1) f32 MXU operands, single fused tile (P = 256 <= tp_target)
    out_f32 = jax.block_until_ready(
        model_up_forward(x, weight, bias, compute_dtype=jnp.float32))
    assert out_f32.shape == (N, Cout, 2 * H, 2 * W), out_f32.shape
    err = float(jnp.max(jnp.abs(out_f32 - ref)))
    assert err < 2e-4, f"f32 fused path: max abs err {err}"

    # 2) f32, forced spatial tiling (tp_target=128 -> 2 tiles) exercising the
    #    two-pass (stats + normalize) pipeline
    out_tiled = jax.block_until_ready(
        model_up_forward(x, weight, bias, compute_dtype=jnp.float32, tp_target=128))
    err = float(jnp.max(jnp.abs(out_tiled - ref)))
    assert err < 2e-4, f"f32 tiled path: max abs err {err}"

    # 3) default bf16 MXU operands (f32 accumulation + f32 norm), compared against
    #    a reference fed the same bf16-rounded operands
    rnd = lambda a: a.astype(jnp.bfloat16).astype(jnp.float32)
    ref_bf = _reference(rnd(x), rnd(weight), bias)
    out_bf = jax.block_until_ready(model_up_forward(x, weight, bias))
    err = float(jnp.max(jnp.abs(out_bf - ref_bf)))
    assert err < 2e-3, f"bf16 path: max abs err {err}"

    print("KERNEL_OK")
</pallas_src>

<mosaic_0001>
module attributes {stable_mosaic.version = 11 : i64} {
  func.func @_fused_kernel(%arg0: i32, %arg1: i32, %arg2: memref<1x16x256xf32, #tpu.memory_space<vmem>>, %arg3: memref<32x16xf32, #tpu.memory_space<vmem>>, %arg4: memref<1x32x256xf32, #tpu.memory_space<vmem>>) attributes {dimension_semantics = [#tpu.dimension_semantics<parallel>, #tpu.dimension_semantics<arbitrary>], iteration_bounds = array<i64: 2, 1>, scalar_prefetch = 0 : i64, scratch_operands = 0 : i64, tpu.core_type = #tpu.core_type<tc>, window_params = [{transform_indices = @transform_0, window_bounds = array<i64: 1, 16, 256>}, {pipeline_mode = #tpu.pipeline_mode<synchronous>, transform_indices = @transform_1, window_bounds = array<i64: 32, 16>}, {transform_indices = @transform_2, window_bounds = array<i64: 1, 32, 256>}]} {
    %c0 = arith.constant 0 : index
    %c0_0 = arith.constant 0 : index
    %0 = vector.load %arg3[%c0, %c0_0] : memref<32x16xf32, #tpu.memory_space<vmem>>, vector<32x16xf32>
    %c0_1 = arith.constant 0 : index
    %c0_2 = arith.constant 0 : index
    %c0_3 = arith.constant 0 : index
    %1 = vector.load %arg2[%c0_1, %c0_2, %c0_3] : memref<1x16x256xf32, #tpu.memory_space<vmem>>, vector<1x16x256xf32>
    %2 = vector.shape_cast %1 : vector<1x16x256xf32> to vector<16x256xf32>
    %cst = arith.constant dense<0.000000e+00> : vector<32x256xf32>
    %3 = tpu.matmul %0, %2, %cst {dimension_numbers = #tpu.dot_dimension_numbers<[1], [0], [0], [1], [0, 0, 1, 1], [], []>} : vector<32x16xf32>, vector<16x256xf32>, vector<32x256xf32> -> vector<32x256xf32>
    %cst_4 = arith.constant dense<0.000000e+00> : vector<32xf32>
    %4 = vector.multi_reduction <add>, %3, %cst_4 [1] : vector<32x256xf32> to vector<32xf32>
    %5 = vector.shape_cast %4 : vector<32xf32> to vector<32x1xf32>
    %6 = vector.shape_cast %5 : vector<32x1xf32> to vector<4x8x1xf32>
    %cst_5 = arith.constant dense<0.000000e+00> : vector<8x1xf32>
    %7 = vector.multi_reduction <add>, %6, %cst_5 [0] : vector<4x8x1xf32> to vector<8x1xf32>
    %cst_6 = arith.constant 1.024000e+03 : f32
    %8 = vector.broadcast %cst_6 : f32 to vector<8x1xf32>
    %9 = arith.divf %7, %8 : vector<8x1xf32>
    %10 = tpu.concatenate %9, %9, %9, %9 in 0 : vector<8x1xf32>, vector<8x1xf32>, vector<8x1xf32>, vector<8x1xf32> -> vector<32x1xf32>
    %11 = vector.broadcast %10 : vector<32x1xf32> to vector<32x256xf32>
    %12 = arith.subf %3, %11 : vector<32x256xf32>
    %13 = arith.mulf %12, %12 : vector<32x256xf32>
    %cst_7 = arith.constant dense<0.000000e+00> : vector<32xf32>
    %14 = vector.multi_reduction <add>, %13, %cst_7 [1] : vector<32x256xf32> to vector<32xf32>
    %15 = vector.shape_cast %14 : vector<32xf32> to vector<32x1xf32>
    %16 = vector.shape_cast %15 : vector<32x1xf32> to vector<4x8x1xf32>
    %cst_8 = arith.constant dense<0.000000e+00> : vector<8x1xf32>
    %17 = vector.multi_reduction <add>, %16, %cst_8 [0] : vector<4x8x1xf32> to vector<8x1xf32>
    %cst_9 = arith.constant 1.024000e+03 : f32
    %18 = vector.broadcast %cst_9 : f32 to vector<8x1xf32>
    %19 = arith.divf %17, %18 : vector<8x1xf32>
    %cst_10 = arith.constant 9.99999974E-6 : f32
    %20 = vector.broadcast %cst_10 : f32 to vector<8x1xf32>
    %21 = arith.addf %19, %20 : vector<8x1xf32>
    %22 = math.rsqrt %21 : vector<8x1xf32>
    %23 = tpu.concatenate %22, %22, %22, %22 in 0 : vector<8x1xf32>, vector<8x1xf32>, vector<8x1xf32>, vector<8x1xf32> -> vector<32x1xf32>
    %24 = vector.broadcast %23 : vector<32x1xf32> to vector<32x256xf32>
    %25 = arith.mulf %12, %24 : vector<32x256xf32>
    %cst_11 = arith.constant 0.000000e+00 : f32
    %26 = vector.broadcast %cst_11 : f32 to vector<32x256xf32>
    %27 = arith.maximumf %25, %26 : vector<32x256xf32>
    %c0_12 = arith.constant 0 : index
    %c0_13 = arith.constant 0 : index
    %c0_14 = arith.constant 0 : index
    %28 = vector.load %arg4[%c0_12, %c0_13, %c0_14] : memref<1x32x256xf32, #tpu.memory_space<vmem>>, vector<1x32x256xf32>
    %29 = vector.shape_cast %28 : vector<1x32x256xf32> to vector<32x256xf32>
    %30 = vector.shape_cast %27 : vector<32x256xf32> to vector<1x32x256xf32>
    tpu.vector_store %arg4[%c0_12, %c0_13, %c0_14], %30 {strides = array<i32>} : memref<1x32x256xf32, #tpu.memory_space<vmem>>, vector<1x32x256xf32>,
    return
  }
  func.func @transform_0(%arg0: i32, %arg1: i32) -> (i32, i32, i32) {
    %c0_i32 = arith.constant 0 : i32
    %c0_i32_0 = arith.constant 0 : i32
    return %arg0, %c0_i32, %arg1 : i32, i32, i32
  }
  func.func @transform_1(%arg0: i32, %arg1: i32) -> (i32, i32) {
    %c0_i32 = arith.constant 0 : i32
    %c0_i32_0 = arith.constant 0 : i32
    %c0_i32_1 = arith.constant 0 : i32
    return %c0_i32, %c0_i32_0 : i32, i32
  }
  func.func @transform_2(%arg0: i32, %arg1: i32) -> (i32, i32, i32) {
    %c0_i32 = arith.constant 0 : i32
    %c0_i32_0 = arith.constant 0 : i32
    return %arg0, %c0_i32, %arg1 : i32, i32, i32
  }
}

</mosaic_0001>

<llo_original>
// kernel: tpu_custom_call.1
$region0: #{tpu_custom_call.1}
  #allocation0 [shape = 'u32[]', space=smem, size = 0x4, offset = 0x4, fixed_abs, tag = 'smem constant byte address 0x4 - core index']
  #allocation1 [shape = 'u32[144,128]{1,0:T(1,128)}', space=vmem, size = 0x12000, scoped, tag = 'internal scratch']
  %s0 = inlined_call_operand.hbm [shape: f32[2,16,256], index: 0, kind: input, shape index: {}]
  %s1 = inlined_call_operand.vmem [shape: f32[32,16], index: 1, kind: input, shape index: {}]
  %s2 = inlined_call_operand.hbm [shape: f32[2,32,256], index: 2, kind: output, shape index: {}]
  %s3 = sld [smem:[#allocation0]]
  $region45: #{tpu_custom_call.1} parent=0
    _
  %s5 = ssub.s32 1, %s3
  %s6 = scalar_select 0, %s5, %s3
  $region1: #{tpu_custom_call.1} parent=0
    #allocation2 [shape = 'u8[32768]{0}', space=vmem, size = 0x8000, scoped, tag = 'input window, operand 0']
    #allocation3 [shape = 's32[2]{0}', space=sflag, size = 0x8, scoped, tag = 'scoped memory for tpu_custom_call.1']
    #allocation4 [shape = 's32[2]{0}', space=sflag, size = 0x8, scoped, tag = 'scoped memory for tpu_custom_call.1']
    #allocation5 [shape = 'u8[65536]{0}', space=vmem, size = 0x10000, scoped, tag = 'output window, operand 0']
    %7 = vsyncpa [#allocation3], 0
    %s8 = scalar_lea.sflag [#allocation3], 1
    %9 = vsyncpa %s8, 0
    %10 = vsyncpa [#allocation4], 0
    %s11 = scalar_lea.sflag [#allocation4], 1
    %12 = vsyncpa %s11, 0
    loop: start=0, step=1, limit=4
    $region2: #{tpu_custom_call.1} parent=1 // loop_pre_header
      _
    $region3: #{tpu_custom_call.1} parent=1 // loop_header
      %s14 = sphi 0, %s18
      %p15 = scmp.ge.s32.totalorder %s14, 4
      %s21 = sphi 0, %s33
      %s22 = sphi 0, %s29
      %s23 = sphi 0, %s21
      %s24 = sphi 0, %s22
      %s25 = sphi 0, %s23
      %s26 = sphi 0, %s24
      %s38 = sphi 0, %s40
      %s41 = sphi 0, %s38
      %s42 = sphi 0, %s41
      %s58 = sphi 0, %s42
      %s62 = sphi 0, %s62
      %s64 = sphi 0, %s62
      %s65 = sphi 0, %s64
      %s79 = sphi 0, %s65
      %s87 = sphi 0, %s89
      %s90 = sphi 0, %s87
      %s91 = sphi 0, %s90
      %s107 = sphi 0, %s91
    $region4: #{tpu_custom_call.1} parent=1 // loop_header_branch
      %17 = sbr.rel (%p15) target = $region8
    $region5: #{tpu_custom_call.1} parent=1 // loop_body
      %s19 = ssub.s32 %s14, 1
      %s20 = ssub.s32 %s14, 2
      %s27 = sadd.s32 1, %s22
      %p28 = scmp.ge.s32.totalorder %s27, 1
      %s29 = scalar_select %p28, 0, %s27
      %s30 = sadd.s32 1, %s21
      %s31 = scalar_select %p28, %s30, %s21
      %p32 = scmp.ge.s32.totalorder %s31, 2
      %s33 = scalar_select %p32, 0, %s31
      %s34 = ssub.s32 %s21, %s33
      %s35 = ssub.s32 %s22, %s29
      %s36 = sor.u32 %s34, %s35
      %p37 = scmp.eq.s32.totalorder %s36, 0
      %s39 = sadd.s32 %s38, 1
      %s40 = scalar_select %p37, %s38, %s39
      %p43 = pneg %p37
      %p44 = scmp.eq.s32.totalorder %s14, 1
      %p45 = por %p43, %p44
      %p46 = scmp.ne.s32.totalorder %s38, %s41
      %p47 = scmp.eq.s32.totalorder %s14, 0
      %p48 = por %p46, %p47
      %p49 = scmp.ne.s32.totalorder %s38, %s41
      %p50 = scmp.eq.s32.totalorder %s19, 1
      %p51 = por %p49, %p50
      %p52 = scmp.ne.s32.totalorder %s41, %s42
      %p53 = scmp.eq.s32.totalorder %s19, 0
      %p54 = por %p52, %p53
      %p55 = scmp.ne.s32.totalorder %s41, %s42
      %p56 = scmp.eq.s32.totalorder %s20, 1
      %p57 = por %p55, %p56
      %p59 = scmp.ne.s32.totalorder %s42, %s58
      %p60 = scmp.eq.s32.totalorder %s20, 0
      %p61 = por %p59, %p60
      %s63 = sadd.s32 %s62, 1
      %p66 = scmp.eq.s32.totalorder %s14, 1
      %p67 = scmp.ne.s32.totalorder %s62, %s64
      %p68 = scmp.eq.s32.totalorder %s14, 0
      %p69 = por %p67, %p68
      %p70 = scmp.ne.s32.totalorder %s62, %s64
      %p71 = scmp.eq.s32.totalorder %s19, 1
      %p72 = por %p70, %p71
      %p73 = scmp.ne.s32.totalorder %s64, %s65
      %p74 = scmp.eq.s32.totalorder %s19, 0
      %p75 = por %p73, %p74
      %p76 = scmp.ne.s32.totalorder %s64, %s65
      %p77 = scmp.eq.s32.totalorder %s20, 1
      %p78 = por %p76, %p77
      %p80 = scmp.ne.s32.totalorder %s65, %s79
      %p81 = scmp.eq.s32.totalorder %s20, 0
      %p82 = por %p80, %p81
      %s83 = ssub.s32 %s21, %s33
      %s84 = ssub.s32 %s22, %s29
      %s85 = sor.u32 %s83, %s84
      %p86 = scmp.eq.s32.totalorder %s85, 0
      %s88 = sadd.s32 %s87, 1
      %s89 = scalar_select %p86, %s87, %s88
      %p92 = pneg %p86
      %p93 = scmp.eq.s32.totalorder %s14, 1
      %p94 = por %p92, %p93
      %p95 = scmp.ne.s32.totalorder %s87, %s90
      %p96 = scmp.eq.s32.totalorder %s14, 0
      %p97 = por %p95, %p96
      %p98 = scmp.ne.s32.totalorder %s87, %s90
      %p99 = scmp.eq.s32.totalorder %s19, 1
      %p100 = por %p98, %p99
      %p101 = scmp.ne.s32.totalorder %s90, %s91
      %p102 = scmp.eq.s32.totalorder %s19, 0
      %p103 = por %p101, %p102
      %p104 = scmp.ne.s32.totalorder %s90, %s91
      %p105 = scmp.eq.s32.totalorder %s20, 1
      %p106 = por %p104, %p105
      %p108 = scmp.ne.s32.totalorder %s91, %s107
      %p109 = scmp.eq.s32.totalorder %s20, 0
      %p110 = por %p108, %p109
      %p111 = scmp.le.s32.totalorder 1, %s14
      %p112 = scmp.lt.s32.totalorder %s14, 3
      %p113 = pnand %p111, %p112
      %p114 = pneg %p113
      // Predicated region
      $region9: #{tpu_custom_call.1} parent=5 // pred_check
        _
      $region10: #{tpu_custom_call.1} parent=5 // pred_check_branch
        %116 = sbr.rel (%p113) target = $region12
      $region11: #{tpu_custom_call.1} parent=5 // pred_region
        %s117 = ssub.s32 %s14, 1
        // Predicated region
        $region13: #{tpu_custom_call.1} parent=11 // pred_check
          %p118 = pneg %p75
        $region14: #{tpu_custom_call.1} parent=11 // pred_check_branch
          %120 = sbr.rel (%p118) target = $region16
        $region15: #{tpu_custom_call.1} parent=11 // pred_region
          _
        $region16: #{tpu_custom_call.1} parent=11 // pred_fallthru
          _
      $region12: #{tpu_custom_call.1} parent=5 // pred_fallthru
        _
      %p121 = scmp.lt.s32.totalorder %s14, 2
      // Predicated region
      $region17: #{tpu_custom_call.1} parent=5 // pred_check
        %p122 = pneg %p121
      $region18: #{tpu_custom_call.1} parent=5 // pred_check_branch
        %124 = sbr.rel (%p122) target = $region20
      $region19: #{tpu_custom_call.1} parent=5 // pred_region
        // Predicated region
        $region21: #{tpu_custom_call.1} parent=19 // pred_check
          %p125 = pneg %p48
        $region22: #{tpu_custom_call.1} parent=19 // pred_check_branch
          %127 = sbr.rel (%p125) target = $region24
        $region23: #{tpu_custom_call.1} parent=19 // pred_region
          %s128 = sand.u32 %s38, 1
          %s129 = scalar_lea.sflag [#allocation3], %s128
          %s130 = sand.u32 %s38, 1
          %s131 = smul.addr %s130, 32
          %s132 = scalar_lea.vmem [#allocation2], %s131
          %s133 = smul.u32 2, %s22
          %s135 = ssub.s32 512, 512
          %136 = vsyncadd %s129, %s135
          %s137 = smul.addr %s21, 4
          %s138 = sadd.s32 %s133, %s137
          %s139 = smul.addr %s138, 128
          %s140 = scalar_lea.hbm %s0, %s139
          %s141 = sshll.u32 %s132, 4
          %s142 = int_to_ptr.vmem [resolvable:$true] %s141
          %147 = dma.hbm_to_vmem [thread:$0]  %s140, 512, %s142, %s129, 256, 256, 16
        $region24: #{tpu_custom_call.1} parent=19 // pred_fallthru
          _
      $region20: #{tpu_custom_call.1} parent=5 // pred_fallthru
        _
      %p148 = scmp.le.s32.totalorder 1, %s14
      %p149 = scmp.lt.s32.totalorder %s14, 3
      %p150 = pnand %p148, %p149
      %p151 = pneg %p150
      // Predicated region
      $region25: #{tpu_custom_call.1} parent=5 // pred_check
        _
      $region26: #{tpu_custom_call.1} parent=5 // pred_check_branch
        %153 = sbr.rel (%p150) target = $region28
      $region27: #{tpu_custom_call.1} parent=5 // pred_region
        %s154 = ssub.s32 %s14, 1
        %s155 = sand.u32 %s41, 1
        %s156 = scalar_lea.sflag [#allocation3], %s155
        %s157 = sand.u32 %s41, 1
        %s158 = smul.addr %s157, 32
        %s159 = scalar_lea.vmem [#allocation2], %s158
        // Predicated region
        $region29: #{tpu_custom_call.1} parent=27 // pred_check
          %p160 = pneg %p54
        $region30: #{tpu_custom_call.1} parent=27 // pred_check_branch
          %162 = sbr.rel (%p160) target = $region32
        $region31: #{tpu_custom_call.1} parent=27 // pred_region
          %163 = dma.done %s156, 512
        $region32: #{tpu_custom_call.1} parent=27 // pred_fallthru
          _
        %s164 = sand.u32 %s41, 1
        %s165 = scalar_lea.sflag [#allocation3], %s164
        %s166 = sand.u32 %s41, 1
        %s167 = smul.addr %s166, 32
        %s168 = scalar_lea.vmem [#allocation2], %s167
        %p169 = pneg %p54
        %p170 = pneg %p51
        %p171 = pneg %p75
        %p172 = pneg %p72
        %p173 = pneg %p103
        %p174 = pneg %p100
        %s175 = sand.u32 %s90, 1
        %s176 = scalar_lea.sflag [#allocation4], %s175
        %s177 = sand.u32 %s90, 1
        %s178 = smul.addr %s177, 64
        %s179 = scalar_lea.vmem [#allocation5], %s178
        %s180 = smul.u32 2, %s24
        %s181 = smul.u32 2, %s24
        %v182 = vld [vmem:[%s1] sm:$0xff]
        %v183 = vld [vmem:[%s1 + $0x8] sm:$0xff]
        %v184 = vld [vmem:[%s1 + $0x10] sm:$0xff]
        %v185 = vld [vmem:[%s1 + $0x18] sm:$0xff]
        %v186 = vld [vmem:[%s159] sm:$0xff]
        %v187 = vld [vmem:[%s159 + $0x8] sm:$0xff]
        %v188 = vld [vmem:[%s159 + $0x10] sm:$0xff]
        %v189 = vld [vmem:[%s159 + $0x18] sm:$0xff]
        %vm190 = vcmask 130048
        %v192 = vsel %vm190, %v182, 0
        %v195 = vsel %vm190, %v183, 0
        %v198 = vsel %vm190, %v184, 0
        %v201 = vsel %vm190, %v185, 0
        %203 = vmatprep.subr.mxu0 %v187
        %204 = vmatpush1.msra.mxu0 %v186
        %205 = vmatprep.subr.mxu0 %v189
        %206 = vmatpush1.msra.mxu0 %v188
        %207 = vmatprep.subr.mxu0 0.0
        %208 = vmatpush1.msra.mxu0 0.0
        %209 = vmatprep.subr.mxu0 0.0
        %210 = vmatpush1.msra.mxu0 0.0
        %211 = vmatprep.subr.mxu0 0.0
        %212 = vmatpush1.msra.mxu0 0.0
        %213 = vmatprep.subr.mxu0 0.0
        %214 = vmatpush1.msra.mxu0 0.0
        %215 = vmatprep.subr.mxu0 0.0
        %216 = vmatpush1.msra.mxu0 0.0
        %217 = vmatprep.subr.mxu0 0.0
        %218 = vmatpush1.msra.mxu0 0.0
        %219 = vmatprep.subr.mxu0 0.0
        %220 = vmatpush1.msra.mxu0 0.0
        %221 = vmatprep.subr.mxu0 0.0
        %222 = vmatpush1.msra.mxu0 0.0
        %223 = vmatprep.subr.mxu0 0.0
        %224 = vmatpush1.msra.mxu0 0.0
        %225 = vmatprep.subr.mxu0 0.0
        %226 = vmatpush1.msra.mxu0 0.0
        %227 = vmatprep.subr.mxu0 0.0
        %228 = vmatpush1.msra.mxu0 0.0
        %229 = vmatprep.subr.mxu0 0.0
        %230 = vmatpush1.msra.mxu0 0.0
        %231 = vmatprep.subr.mxu0 0.0
        %232 = vmatpush1.msra.mxu0 0.0
        %233 = vmatprep.subr.mxu0 0.0
        %234 = vmatpush1.msra.mxu0 0.0
        %235 = vmatprep.subr.mxu0 0.0
        %236 = vmatpush1.msra.mxu0 0.0
        %237 = vmatprep.subr.mxu0 0.0
        %238 = vmatpush1.msra.mxu0 0.0
        %239 = vmatprep.subr.mxu0 0.0
        %240 = vmatpush1.msra.mxu0 0.0
        %241 = vmatprep.subr.mxu0 0.0
        %242 = vmatpush1.msra.mxu0 0.0
        %243 = vmatprep.subr.mxu0 0.0
        %244 = vmatpush1.msra.mxu0 0.0
        %245 = vmatprep.subr.mxu0 0.0
        %246 = vmatpush1.msra.mxu0 0.0
        %247 = vmatprep.subr.mxu0 0.0
        %248 = vmatpush1.msra.mxu0 0.0
        %249 = vmatprep.subr.mxu0 0.0
        %250 = vmatpush1.msra.mxu0 0.0
        %251 = vmatprep.subr.mxu0 0.0
        %252 = vmatpush1.msra.mxu0 0.0
        %253 = vmatprep.subr.mxu0 0.0
        %254 = vmatpush1.msra.mxu0 0.0
        %255 = vmatprep.subr.mxu0 0.0
        %256 = vmatpush1.msra.mxu0 0.0
        %257 = vmatprep.subr.mxu0 0.0
        %258 = vmatpush1.msra.mxu0 0.0
        %259 = vmatprep.subr.mxu0 0.0
        %260 = vmatpush1.msra.mxu0 0.0
        %261 = vmatprep.subr.mxu0 0.0
        %262 = vmatpush1.msra.mxu0 0.0
        %263 = vmatprep.subr.mxu0 0.0
        %264 = vmatpush1.msra.mxu0 0.0
        %265 = vmatprep.subr.mxu0 0.0
        %266 = vmatpush1.msra.mxu0 0.0
        %267 = vmatprep.mubr.f32.mxu0 0.0
        %268 = vmatmul.mubr.f32.gmra.mrb[0].mxu0 %v192
        %v269 = vpop.f32.mrb[0].mxu0
        %v270 = vadd.f32 0.0, %v269
        %v271 = vpop.f32.mrb[0].mxu0
        %v272 = vadd.f32 0.0, %v271
        %273 = vmatprep.mubr.f32.mxu0 0.0
        %274 = vmatmul.mubr.f32.gmra.mrb[0].mxu0 %v195
        %v275 = vpop.f32.mrb[0].mxu0
        %v276 = vadd.f32 0.0, %v275
        %v277 = vpop.f32.mrb[0].mxu0
        %v278 = vadd.f32 0.0, %v277
        %279 = vmatprep.mubr.f32.mxu0 0.0
        %280 = vmatmul.mubr.f32.gmra.mrb[0].mxu0 %v198
        %v281 = vpop.f32.mrb[0].mxu0
        %v282 = vadd.f32 0.0, %v281
        %v283 = vpop.f32.mrb[0].mxu0
        %v284 = vadd.f32 0.0, %v283
        %285 = vmatprep.mubr.f32.mxu0 0.0
        %286 = vmatmul.mubr.f32.gmra.mrb[0].mxu0 %v201
        %v287 = vpop.f32.mrb[0].mxu0
        %v288 = vadd.f32 0.0, %v287
        %v289 = vpop.f32.mrb[0].mxu0
        %v290 = vadd.f32 0.0, %v289
        %291 = vdwg.mxu0
        %v292 = vadd.f32 %v270, %v272
        %293 = vadd.xlane.f32.xlu0 %v292
        %v294 = vpop.xlane.xlu0 %293
        %v295 = vadd.f32 %v276, %v278
        %296 = vadd.xlane.f32.xlu0 %v295
        %v297 = vpop.xlane.xlu0 %296
        %v298 = vadd.f32 %v282, %v284
        %299 = vadd.xlane.f32.xlu0 %v298
        %v300 = vpop.xlane.xlu0 %299
        %v301 = vadd.f32 %v288, %v290
        %302 = vadd.xlane.f32.xlu0 %v301
        %v303 = vpop.xlane.xlu0 %302
        %v304 = vadd.f32 %v294, %v297
        %v305 = vadd.f32 %v304, %v300
        %v306 = vadd.f32 %v305, %v303
        %v307 = vrcp.pop 1024.0
        %v308 = vmul.f32 %v306, %v307
        %310 = vset.pattern.permute.xlu0 0
        %311 = vperm.xlu0 %310, %v308
        %v312 = vpop.permute.xlu0 %311
        %v314 = vsub.f32 %v270, %v312
        %v315 = vsub.f32 %v272, %v312
        %v316 = vsub.f32 %v276, %v312
        %v317 = vsub.f32 %v278, %v312
        %v318 = vsub.f32 %v282, %v312
        %v319 = vsub.f32 %v284, %v312
        %v320 = vsub.f32 %v288, %v312
        %v321 = vsub.f32 %v290, %v312
        %v322 = vmul.f32 %v314, %v314
        %v323 = vmul.f32 %v315, %v315
        %v324 = vmul.f32 %v316, %v316
        %v325 = vmul.f32 %v317, %v317
        %v326 = vmul.f32 %v318, %v318
        %v327 = vmul.f32 %v319, %v319
        %v328 = vmul.f32 %v320, %v320
        %v329 = vmul.f32 %v321, %v321
        %v330 = vadd.f32 %v322, %v323
        %331 = vadd.xlane.f32.xlu0 %v330
        %v332 = vpop.xlane.xlu0 %331
        %v333 = vadd.f32 %v324, %v325
        %334 = vadd.xlane.f32.xlu0 %v333
        %v335 = vpop.xlane.xlu0 %334
        %v336 = vadd.f32 %v326, %v327
        %337 = vadd.xlane.f32.xlu0 %v336
        %v338 = vpop.xlane.xlu0 %337
        %v339 = vadd.f32 %v328, %v329
        %340 = vadd.xlane.f32.xlu0 %v339
        %v341 = vpop.xlane.xlu0 %340
        %v342 = vadd.f32 %v332, %v335
        %v343 = vadd.f32 %v342, %v338
        %v344 = vadd.f32 %v343, %v341
        %v345 = vmul.f32 %v344, %v307
        %v346 = vadd.f32 %v345, 1e-05
        %v347 = vrsqrt.pop %v346
        %349 = vset.pattern.permute.xlu0 0
        %350 = vperm.xlu0 %349, %v347
        %v351 = vpop.permute.xlu0 %350
        %v353 = vmul.f32 %v314, %v351
        %v354 = vmul.f32 %v315, %v351
        %v355 = vmul.f32 %v316, %v351
        %v356 = vmul.f32 %v317, %v351
        %v357 = vmul.f32 %v318, %v351
        %v358 = vmul.f32 %v319, %v351
        %v359 = vmul.f32 %v320, %v351
        %v360 = vmul.f32 %v321, %v351
        %v361 = vmax.f32 %v353, 0.0
        %v362 = vmax.f32 %v354, 0.0
        %v363 = vmax.f32 %v355, 0.0
        %v364 = vmax.f32 %v356, 0.0
        %v365 = vmax.f32 %v357, 0.0
        %v366 = vmax.f32 %v358, 0.0
        %v367 = vmax.f32 %v359, 0.0
        %v368 = vmax.f32 %v360, 0.0
        %369 = vst [vmem:[%s179] sm:$0xff] %v361
        %370 = vst [vmem:[%s179 + $0x8] sm:$0xff] %v362
        %371 = vst [vmem:[%s179 + $0x10] sm:$0xff] %v363
        %372 = vst [vmem:[%s179 + $0x18] sm:$0xff] %v364
        %373 = vst [vmem:[%s179 + $0x20] sm:$0xff] %v365
        %374 = vst [vmem:[%s179 + $0x28] sm:$0xff] %v366
        %375 = vst [vmem:[%s179 + $0x30] sm:$0xff] %v367
        %376 = vst [vmem:[%s179 + $0x38] sm:$0xff] %v368
        %s377 = sand.u32 %s90, 1
        %s378 = scalar_lea.sflag [#allocation4], %s377
        %s379 = sand.u32 %s90, 1
        %s380 = smul.addr %s379, 64
        %s381 = scalar_lea.vmem [#allocation5], %s380
        // Predicated region
        $region33: #{tpu_custom_call.1} parent=27 // pred_check
          %p382 = pneg %p100
        $region34: #{tpu_custom_call.1} parent=27 // pred_check_branch
          %384 = sbr.rel (%p382) target = $region36
        $region35: #{tpu_custom_call.1} parent=27 // pred_region
          %s385 = smul.u32 2, %s24
          %s387 = ssub.s32 1024, 1024
          %388 = vsyncadd %s378, %s387
          %s389 = smul.addr %s23, 8
          %s390 = sadd.s32 %s385, %s389
          %s391 = smul.addr %s390, 128
          %s392 = scalar_lea.hbm %s2, %s391
          %s393 = sshll.u32 %s381, 4
          %s394 = int_to_ptr.vmem [resolvable:$true] %s393
          %399 = dma.vmem_to_hbm [thread:$0]  %s394, 1024, %s392, %s378, 256, 256, 16
        $region36: #{tpu_custom_call.1} parent=27 // pred_fallthru
          _
      $region28: #{tpu_custom_call.1} parent=5 // pred_fallthru
        _
      %p400 = scmp.le.s32.totalorder 2, %s14
      // Predicated region
      $region37: #{tpu_custom_call.1} parent=5 // pred_check
        %p401 = pneg %p400
      $region38: #{tpu_custom_call.1} parent=5 // pred_check_branch
        %403 = sbr.rel (%p401) target = $region40
      $region39: #{tpu_custom_call.1} parent=5 // pred_region
        %s404 = ssub.s32 %s14, 2
        // Predicated region
        $region41: #{tpu_custom_call.1} parent=39 // pred_check
          %p405 = pneg %p106
        $region42: #{tpu_custom_call.1} parent=39 // pred_check_branch
          %407 = sbr.rel (%p405) target = $region44
        $region43: #{tpu_custom_call.1} parent=39 // pred_region
          %s408 = sand.u32 %s91, 1
          %s409 = scalar_lea.sflag [#allocation4], %s408
          %s410 = sand.u32 %s91, 1
          %s411 = smul.addr %s410, 64
          %s412 = scalar_lea.vmem [#allocation5], %s411
          %413 = dma.done %s409, 1024
        $region44: #{tpu_custom_call.1} parent=39 // pred_fallthru
          _
      $region40: #{tpu_custom_call.1} parent=5 // pred_fallthru
        _
    $region6: #{tpu_custom_call.1} parent=1 // loop_footer
      %s18 = sadd.s32 1, %s14
    $region7: #{tpu_custom_call.1} parent=1 // loop_footer_branch
      %13 = sbr.rel target = $region3
    $region8: #{tpu_custom_call.1} parent=1 // loop_exit
      _
    %414 = vsyncpa [#allocation3], 1
    %s415 = scalar_lea.sflag [#allocation3], 1
    %416 = vsyncpa %s415, 1
    %417 = vsyncpa [#allocation4], 1
    %s418 = scalar_lea.sflag [#allocation4], 1
    %419 = vsyncpa %s418, 1

</llo_original>
